<compile_context>
chip_gen: v7x
topology: tpu7x:2x2x1
jax: 0.10.0
libtpu: 0.0.40
codegen_flags: <defaults>
</compile_context>

<pallas_src>
import functools

import jax
import jax.numpy as jnp
from jax.experimental import pallas as pl
from jax.experimental.pallas import tpu as pltpu

SUBLANE = 8


def _round_up(n: int, m: int) -> int:
    return ((n + m - 1) // m) * m


def _fused_mlp_kernel(*refs, num_layers: int):
    """Whole MLP on one batch tile of x.

    refs = (x_ref, w_0, ..., w_{L-1}, b_stack_ref, out_ref)
      x_ref       : (TB, d_in)        VMEM, double-buffered over batch tiles
      w_i         : (d_i, d_{i+1})    VMEM, resident across batch tiles
      b_stack_ref : (L, d_max) f32    VMEM, resident (row i = bias of layer i)
      out_ref     : (TB, d_out) f32   VMEM
    """
    x_ref = refs[0]
    w_refs = refs[1:1 + num_layers]
    b_ref = refs[1 + num_layers]
    out_ref = refs[-1]

    h = x_ref[...]
    for li in range(num_layers):
        w = w_refs[li][...]
        d_l = w.shape[1]
        b = b_ref[pl.ds(li, 1), pl.ds(0, d_l)]  # (1, d_l), f32
        # MXU matmul: operands in w.dtype (f32 or bf16), f32 accumulation.
        y = jnp.dot(h.astype(w.dtype), w, preferred_element_type=jnp.float32) + b
        if li < num_layers - 1:
            # PyTorch Softplus(beta=1, threshold=20) in the overflow-safe
            # max/abs form (differs by < 2e-9 above the threshold): one exp +
            # one log1p on the EUP, no extra min/compare/select on the VALU.
            # Kept in f32 (v5e has no bf16 EUP).
            y = jnp.maximum(y, 0.0) + jnp.log1p(jnp.exp(-jnp.abs(y)))
            # Dropout: identity in eval/inference mode.
        h = y
    out_ref[...] = h.astype(out_ref.dtype)


class TabTransformerPallas:
    """Pallas TPU mirror of TabTransformer.make_baseline (Softplus blocks, eval mode)."""

    def __init__(self, d_in, d_layers, d_out, key, use_bf16: bool = False):
        self.d_in = int(d_in)
        self.d_layers = list(d_layers)
        self.d_out = int(d_out)
        self.use_bf16 = bool(use_bf16)
        self.mm_dtype = jnp.bfloat16 if self.use_bf16 else jnp.float32
        self._single_buffer_ok = None  # lazily probed pl.Buffered(1) support

        dims = [self.d_in] + self.d_layers + [self.d_out]
        keys = jax.random.split(key, len(dims) - 1)

        # Unpadded f32 parameters (also used by the pure-JAX reference).
        # Weights are stored (fan_in, fan_out) so the kernel computes x @ W + b.
        self.params = []
        for i in range(len(dims) - 1):
            fan_in, fan_out = dims[i], dims[i + 1]
            bound = 1.0 / float(fan_in) ** 0.5
            kw, kb = jax.random.split(keys[i])
            W = jax.random.uniform(kw, (fan_in, fan_out), jnp.float32, -bound, bound)
            b = jax.random.uniform(kb, (fan_out,), jnp.float32, -bound, bound)
            self.params.append((W, b))

        # Kernel operands: matmul weights (optionally bf16) + all biases folded
        # into one stacked (L, d_max) f32 array (one DMA / buffer pair).
        self.kernel_weights = [W.astype(self.mm_dtype) for W, _ in self.params]
        self.d_max = max(dims[1:])
        b_stack = jnp.zeros((len(self.params), self.d_max), jnp.float32)
        for i, (_, b) in enumerate(self.params):
            b_stack = b_stack.at[i, : b.shape[0]].set(b)
        self.bias_stack = b_stack

    def __call__(self, x):
        if self._single_buffer_ok is None:
            # pl.Buffered(1) single-buffers the constant weight/bias specs
            # (VMEM saving, matters on v7x's 64 MiB). Fall back gracefully if
            # this JAX build rejects the pipeline_mode request.
            try:
                out = self._forward(x, single_buffer_weights=True)
                self._single_buffer_ok = True
                return out
            except Exception:
                self._single_buffer_ok = False
        return self._forward(x, single_buffer_weights=self._single_buffer_ok)

    def _forward(self, x, single_buffer_weights: bool):
        x = x.astype(jnp.float32)
        B = x.shape[0]
        num_layers = len(self.params)
        d_in, d_out = self.d_in, self.d_out

        # Batch tile: large tiles amortize the ~0.35us/step pipeline overhead
        # (v6e: ~29% of HBM roofline at TB=128 vs ~85% at 512+). Keep >= 2
        # tiles when the batch allows so the "parallel" axis can split across
        # both v7x TensorCores.
        if B >= 8192:
            TB = 1024
        elif B >= 1024:
            TB = 512
        elif B > 128:
            TB = _round_up((B + 1) // 2, SUBLANE)
        else:
            TB = _round_up(max(B, 1), SUBLANE)
        Bp = _round_up(B, TB)
        grid = (Bp // TB,)

        x_in = x.astype(self.mm_dtype)
        if Bp != B:
            x_in = jnp.zeros((Bp, d_in), self.mm_dtype).at[:B].set(x_in)

        # Weights/bias: full-array blocks with constant index_map -> fetched
        # once, VMEM-resident across every batch tile.
        wb_kwargs = {}
        if single_buffer_weights:
            wb_kwargs["pipeline_mode"] = pl.Buffered(1)

        in_specs = [pl.BlockSpec((TB, d_in), lambda i: (i, 0))]
        for W in self.kernel_weights:
            in_specs.append(pl.BlockSpec(W.shape, lambda i: (0, 0), **wb_kwargs))
        in_specs.append(
            pl.BlockSpec(self.bias_stack.shape, lambda i: (0, 0), **wb_kwargs))

        # Cost estimate + explicit VMEM budget (defaults are 16/32 MiB).
        itemsize = 2 if self.use_bf16 else 4
        flops = sum(2 * Bp * W.shape[0] * W.shape[1] for W in self.kernel_weights)
        transcendentals = 2 * Bp * sum(self.d_layers)  # exp + log1p per hidden elem
        param_bytes = (sum(W.size for W in self.kernel_weights) * itemsize
                       + self.bias_stack.size * 4)
        bytes_accessed = x_in.size * itemsize + Bp * d_out * 4 + param_bytes

        wbuf = 1 if single_buffer_weights else 2
        vmem_needed = (param_bytes * wbuf
                       + 2 * TB * d_in * itemsize   # x double buffer
                       + 2 * TB * d_out * 4)        # out double buffer
        vmem_limit = int(max(min(2 * vmem_needed + (8 << 20), 64 << 20), 16 << 20))

        kernel = functools.partial(_fused_mlp_kernel, num_layers=num_layers)
        out = pl.pallas_call(
            kernel,
            out_shape=jax.ShapeDtypeStruct((Bp, d_out), jnp.float32),
            grid=grid,
            in_specs=in_specs,
            out_specs=pl.BlockSpec((TB, d_out), lambda i: (i, 0)),
            compiler_params=pltpu.CompilerParams(
                dimension_semantics=("parallel",),
                vmem_limit_bytes=vmem_limit,
            ),
            cost_estimate=pl.CostEstimate(
                flops=int(flops),
                transcendentals=int(transcendentals),
                bytes_accessed=int(bytes_accessed),
            ),
        )(x_in, *self.kernel_weights, self.bias_stack)

        return out if Bp == B else out[:B]


def _reference_forward(model: TabTransformerPallas, x):
    """Pure-JAX reference (unpadded f32 params, PyTorch Softplus semantics)."""
    x = x.astype(jnp.float32)
    for (W, b) in model.params[:-1]:
        y = x @ W + b
        x = jnp.where(y > 20.0, y, jnp.log1p(jnp.exp(jnp.minimum(y, 20.0))))
    Wh, bh = model.params[-1]
    return x @ Wh + bh


if __name__ == "__main__":
    key = jax.random.PRNGKey(0)
    k_data, k_params = jax.random.split(key)

    # Small shapes consistent with the tabular MLP forward.
    batch = 16
    d_in = 16
    d_layers = [32, 32]
    d_out = 4

    x = jax.random.normal(k_data, (batch, d_in), jnp.float32)

    # f32 path: tight check against the pure-JAX reference.
    model = TabTransformerPallas(d_in, d_layers, d_out, k_params)
    out = jax.block_until_ready(model(x))
    ref = _reference_forward(model, x)
    assert out.shape == (batch, d_out), out.shape
    assert jnp.allclose(out, ref, atol=1e-5, rtol=1e-5), "mismatch vs reference (f32)"

    # bf16-matmul path (v5e/v6e/v7x perf option): looser tolerance.
    model_bf16 = TabTransformerPallas(d_in, d_layers, d_out, k_params, use_bf16=True)
    out_bf16 = jax.block_until_ready(model_bf16(x))
    assert out_bf16.shape == (batch, d_out), out_bf16.shape
    assert jnp.allclose(out_bf16, ref, atol=5e-2, rtol=5e-2), "mismatch vs reference (bf16)"

    print("KERNEL_OK")
</pallas_src>

<mosaic_0001>
module attributes {stable_mosaic.version = 11 : i64} {
  func.func @_fused_mlp_kernel(%arg0: i32, %arg1: memref<16x16xf32, #tpu.memory_space<vmem>>, %arg2: memref<16x32xf32, #tpu.memory_space<vmem>>, %arg3: memref<32x32xf32, #tpu.memory_space<vmem>>, %arg4: memref<32x4xf32, #tpu.memory_space<vmem>>, %arg5: memref<3x32xf32, #tpu.memory_space<vmem>>, %arg6: memref<16x4xf32, #tpu.memory_space<vmem>>) attributes {dimension_semantics = [#tpu.dimension_semantics<parallel>], iteration_bounds = array<i64: 1>, scalar_prefetch = 0 : i64, scratch_operands = 0 : i64, tpu.core_type = #tpu.core_type<tc>, window_params = [{transform_indices = @transform_0, window_bounds = array<i64: 16, 16>}, {pipeline_mode = #tpu.pipeline_mode<synchronous>, transform_indices = @transform_1, window_bounds = array<i64: 16, 32>}, {pipeline_mode = #tpu.pipeline_mode<synchronous>, transform_indices = @transform_2, window_bounds = array<i64: 32, 32>}, {pipeline_mode = #tpu.pipeline_mode<synchronous>, transform_indices = @transform_3, window_bounds = array<i64: 32, 4>}, {pipeline_mode = #tpu.pipeline_mode<synchronous>, transform_indices = @transform_4, window_bounds = array<i64: 3, 32>}, {transform_indices = @transform_5, window_bounds = array<i64: 16, 4>}]} {
    %c0 = arith.constant 0 : index
    %c0_0 = arith.constant 0 : index
    %0 = vector.load %arg1[%c0, %c0_0] : memref<16x16xf32, #tpu.memory_space<vmem>>, vector<16x16xf32>
    %c0_1 = arith.constant 0 : index
    %c0_2 = arith.constant 0 : index
    %1 = vector.load %arg2[%c0_1, %c0_2] : memref<16x32xf32, #tpu.memory_space<vmem>>, vector<16x32xf32>
    %c0_3 = arith.constant 0 : index
    %c0_4 = arith.constant 0 : index
    %2 = vector.load %arg5[%c0_3, %c0_4] : memref<3x32xf32, #tpu.memory_space<vmem>>, vector<1x32xf32>
    %cst = arith.constant dense<0.000000e+00> : vector<16x32xf32>
    %3 = tpu.matmul %0, %1, %cst {dimension_numbers = #tpu.dot_dimension_numbers<[1], [0], [0], [1], [0, 0, 1, 1], [], []>} : vector<16x16xf32>, vector<16x32xf32>, vector<16x32xf32> -> vector<16x32xf32>
    %4 = vector.broadcast %2 : vector<1x32xf32> to vector<16x32xf32>
    %5 = arith.addf %3, %4 : vector<16x32xf32>
    %cst_5 = arith.constant 0.000000e+00 : f32
    %6 = vector.broadcast %cst_5 : f32 to vector<16x32xf32>
    %7 = arith.maximumf %5, %6 : vector<16x32xf32>
    %8 = math.absf %5 : vector<16x32xf32>
    %cst_6 = arith.constant 0.000000e+00 : f32
    %9 = vector.broadcast %cst_6 : f32 to vector<16x32xf32>
    %10 = arith.subf %9, %8 : vector<16x32xf32>
    %11 = math.exp %10 : vector<16x32xf32>
    %12 = math.log1p %11 : vector<16x32xf32>
    %13 = arith.addf %7, %12 : vector<16x32xf32>
    %c0_7 = arith.constant 0 : index
    %c0_8 = arith.constant 0 : index
    %14 = vector.load %arg3[%c0_7, %c0_8] : memref<32x32xf32, #tpu.memory_space<vmem>>, vector<32x32xf32>
    %c1 = arith.constant 1 : index
    %c0_9 = arith.constant 0 : index
    %15 = vector.load %arg5[%c1, %c0_9] : memref<3x32xf32, #tpu.memory_space<vmem>>, vector<1x32xf32>
    %cst_10 = arith.constant dense<0.000000e+00> : vector<16x32xf32>
    %16 = tpu.matmul %13, %14, %cst_10 {dimension_numbers = #tpu.dot_dimension_numbers<[1], [0], [0], [1], [0, 0, 1, 1], [], []>} : vector<16x32xf32>, vector<32x32xf32>, vector<16x32xf32> -> vector<16x32xf32>
    %17 = vector.broadcast %15 : vector<1x32xf32> to vector<16x32xf32>
    %18 = arith.addf %16, %17 : vector<16x32xf32>
    %cst_11 = arith.constant 0.000000e+00 : f32
    %19 = vector.broadcast %cst_11 : f32 to vector<16x32xf32>
    %20 = arith.maximumf %18, %19 : vector<16x32xf32>
    %21 = math.absf %18 : vector<16x32xf32>
    %cst_12 = arith.constant 0.000000e+00 : f32
    %22 = vector.broadcast %cst_12 : f32 to vector<16x32xf32>
    %23 = arith.subf %22, %21 : vector<16x32xf32>
    %24 = math.exp %23 : vector<16x32xf32>
    %25 = math.log1p %24 : vector<16x32xf32>
    %26 = arith.addf %20, %25 : vector<16x32xf32>
    %c0_13 = arith.constant 0 : index
    %c0_14 = arith.constant 0 : index
    %27 = vector.load %arg4[%c0_13, %c0_14] : memref<32x4xf32, #tpu.memory_space<vmem>>, vector<32x4xf32>
    %c2 = arith.constant 2 : index
    %c0_15 = arith.constant 0 : index
    %28 = vector.load %arg5[%c2, %c0_15] : memref<3x32xf32, #tpu.memory_space<vmem>>, vector<1x4xf32>
    %cst_16 = arith.constant dense<0.000000e+00> : vector<16x4xf32>
    %29 = tpu.matmul %26, %27, %cst_16 {dimension_numbers = #tpu.dot_dimension_numbers<[1], [0], [0], [1], [0, 0, 1, 1], [], []>} : vector<16x32xf32>, vector<32x4xf32>, vector<16x4xf32> -> vector<16x4xf32>
    %30 = vector.broadcast %28 : vector<1x4xf32> to vector<16x4xf32>
    %31 = arith.addf %29, %30 : vector<16x4xf32>
    %c0_17 = arith.constant 0 : index
    %c0_18 = arith.constant 0 : index
    %32 = vector.load %arg6[%c0_17, %c0_18] : memref<16x4xf32, #tpu.memory_space<vmem>>, vector<16x4xf32>
    tpu.vector_store %arg6[%c0_17, %c0_18], %31 {strides = array<i32>} : memref<16x4xf32, #tpu.memory_space<vmem>>, vector<16x4xf32>,
    return
  }
  func.func @transform_0(%arg0: i32) -> (i32, i32) {
    %c0_i32 = arith.constant 0 : i32
    %c0_i32_0 = arith.constant 0 : i32
    return %arg0, %c0_i32 : i32, i32
  }
  func.func @transform_1(%arg0: i32) -> (i32, i32) {
    %c0_i32 = arith.constant 0 : i32
    %c0_i32_0 = arith.constant 0 : i32
    %c0_i32_1 = arith.constant 0 : i32
    return %c0_i32, %c0_i32_0 : i32, i32
  }
  func.func @transform_2(%arg0: i32) -> (i32, i32) {
    %c0_i32 = arith.constant 0 : i32
    %c0_i32_0 = arith.constant 0 : i32
    %c0_i32_1 = arith.constant 0 : i32
    return %c0_i32, %c0_i32_0 : i32, i32
  }
  func.func @transform_3(%arg0: i32) -> (i32, i32) {
    %c0_i32 = arith.constant 0 : i32
    %c0_i32_0 = arith.constant 0 : i32
    %c0_i32_1 = arith.constant 0 : i32
    return %c0_i32, %c0_i32_0 : i32, i32
  }
  func.func @transform_4(%arg0: i32) -> (i32, i32) {
    %c0_i32 = arith.constant 0 : i32
    %c0_i32_0 = arith.constant 0 : i32
    %c0_i32_1 = arith.constant 0 : i32
    return %c0_i32, %c0_i32_0 : i32, i32
  }
  func.func @transform_5(%arg0: i32) -> (i32, i32) {
    %c0_i32 = arith.constant 0 : i32
    %c0_i32_0 = arith.constant 0 : i32
    return %arg0, %c0_i32 : i32, i32
  }
}

module attributes {stable_mosaic.version = 11 : i64} {
  func.func @_fused_mlp_kernel(%arg0: i32, %arg1: memref<16x16xf32, #tpu.memory_space<vmem>>, %arg2: memref<16x32xf32, #tpu.memory_space<vmem>>, %arg3: memref<32x32xf32, #tpu.memory_space<vmem>>, %arg4: memref<32x4xf32, #tpu.memory_space<vmem>>, %arg5: memref<3x32xf32, #tpu.memory_space<vmem>>, %arg6: memref<16x4xf32, #tpu.memory_space<vmem>>) attributes {dimension_semantics = [#tpu.dimension_semantics<parallel>], iteration_bounds = array<i64: 1>, scalar_prefetch = 0 : i64, scratch_operands = 0 : i64, tpu.core_type = #tpu.core_type<tc>, window_params = [{transform_indices = @transform_0, window_bounds = array<i64: 16, 16>}, {pipeline_mode = #tpu.pipeline_mode<synchronous>, transform_indices = @transform_1, window_bounds = array<i64: 16, 32>}, {pipeline_mode = #tpu.pipeline_mode<synchronous>, transform_indices = @transform_2, window_bounds = array<i64: 32, 32>}, {pipeline_mode = #tpu.pipeline_mode<synchronous>, transform_indices = @transform_3, window_bounds = array<i64: 32, 4>}, {pipeline_mode = #tpu.pipeline_mode<synchronous>, transform_indices = @transform_4, window_bounds = array<i64: 3, 32>}, {transform_indices = @transform_5, window_bounds = array<i64: 16, 4>}]} {
    %c0 = arith.constant 0 : index
    %c0_0 = arith.constant 0 : index
    %0 = vector.load %arg1[%c0, %c0_0] : memref<16x16xf32, #tpu.memory_space<vmem>>, vector<16x16xf32>
    %c0_1 = arith.constant 0 : index
    %c0_2 = arith.constant 0 : index
    %1 = vector.load %arg2[%c0_1, %c0_2] : memref<16x32xf32, #tpu.memory_space<vmem>>, vector<16x32xf32>
    %c0_3 = arith.constant 0 : index
    %c0_4 = arith.constant 0 : index
    %2 = vector.load %arg5[%c0_3, %c0_4] : memref<3x32xf32, #tpu.memory_space<vmem>>, vector<1x32xf32>
    %cst = arith.constant dense<0.000000e+00> : vector<16x32xf32>
    %3 = tpu.matmul %0, %1, %cst {dimension_numbers = #tpu.dot_dimension_numbers<[1], [0], [0], [1], [0, 0, 1, 1], [], []>} : vector<16x16xf32>, vector<16x32xf32>, vector<16x32xf32> -> vector<16x32xf32>
    %4 = vector.broadcast %2 : vector<1x32xf32> to vector<16x32xf32>
    %5 = arith.addf %3, %4 : vector<16x32xf32>
    %cst_5 = arith.constant 0.000000e+00 : f32
    %6 = vector.broadcast %cst_5 : f32 to vector<16x32xf32>
    %7 = arith.maximumf %5, %6 : vector<16x32xf32>
    %8 = math.absf %5 : vector<16x32xf32>
    %cst_6 = arith.constant 0.000000e+00 : f32
    %9 = vector.broadcast %cst_6 : f32 to vector<16x32xf32>
    %10 = arith.subf %9, %8 : vector<16x32xf32>
    %11 = math.exp %10 : vector<16x32xf32>
    %12 = math.log1p %11 : vector<16x32xf32>
    %13 = arith.addf %7, %12 : vector<16x32xf32>
    %c0_7 = arith.constant 0 : index
    %c0_8 = arith.constant 0 : index
    %14 = vector.load %arg3[%c0_7, %c0_8] : memref<32x32xf32, #tpu.memory_space<vmem>>, vector<32x32xf32>
    %c1 = arith.constant 1 : index
    %c0_9 = arith.constant 0 : index
    %15 = vector.load %arg5[%c1, %c0_9] : memref<3x32xf32, #tpu.memory_space<vmem>>, vector<1x32xf32>
    %cst_10 = arith.constant dense<0.000000e+00> : vector<16x32xf32>
    %16 = tpu.matmul %13, %14, %cst_10 {dimension_numbers = #tpu.dot_dimension_numbers<[1], [0], [0], [1], [0, 0, 1, 1], [], []>} : vector<16x32xf32>, vector<32x32xf32>, vector<16x32xf32> -> vector<16x32xf32>
    %17 = vector.broadcast %15 : vector<1x32xf32> to vector<16x32xf32>
    %18 = arith.addf %16, %17 : vector<16x32xf32>
    %cst_11 = arith.constant 0.000000e+00 : f32
    %19 = vector.broadcast %cst_11 : f32 to vector<16x32xf32>
    %20 = arith.maximumf %18, %19 : vector<16x32xf32>
    %21 = math.absf %18 : vector<16x32xf32>
    %cst_12 = arith.constant 0.000000e+00 : f32
    %22 = vector.broadcast %cst_12 : f32 to vector<16x32xf32>
    %23 = arith.subf %22, %21 : vector<16x32xf32>
    %24 = math.exp %23 : vector<16x32xf32>
    %25 = math.log1p %24 : vector<16x32xf32>
    %26 = arith.addf %20, %25 : vector<16x32xf32>
    %c0_13 = arith.constant 0 : index
    %c0_14 = arith.constant 0 : index
    %27 = vector.load %arg4[%c0_13, %c0_14] : memref<32x4xf32, #tpu.memory_space<vmem>>, vector<32x4xf32>
    %c2 = arith.constant 2 : index
    %c0_15 = arith.constant 0 : index
    %28 = vector.load %arg5[%c2, %c0_15] : memref<3x32xf32, #tpu.memory_space<vmem>>, vector<1x4xf32>
    %cst_16 = arith.constant dense<0.000000e+00> : vector<16x4xf32>
    %29 = tpu.matmul %26, %27, %cst_16 {dimension_numbers = #tpu.dot_dimension_numbers<[1], [0], [0], [1], [0, 0, 1, 1], [], []>} : vector<16x32xf32>, vector<32x4xf32>, vector<16x4xf32> -> vector<16x4xf32>
    %30 = vector.broadcast %28 : vector<1x4xf32> to vector<16x4xf32>
    %31 = arith.addf %29, %30 : vector<16x4xf32>
    %c0_17 = arith.constant 0 : index
    %c0_18 = arith.constant 0 : index
    %32 = vector.load %arg6[%c0_17, %c0_18] : memref<16x4xf32, #tpu.memory_space<vmem>>, vector<16x4xf32>
    tpu.vector_store %arg6[%c0_17, %c0_18], %31 {strides = array<i32>} : memref<16x4xf32, #tpu.memory_space<vmem>>, vector<16x4xf32>,
    return
  }
  func.func @transform_0(%arg0: i32) -> (i32, i32) {
    %c0_i32 = arith.constant 0 : i32
    %c0_i32_0 = arith.constant 0 : i32
    return %arg0, %c0_i32 : i32, i32
  }
  func.func @transform_1(%arg0: i32) -> (i32, i32) {
    %c0_i32 = arith.constant 0 : i32
    %c0_i32_0 = arith.constant 0 : i32
    %c0_i32_1 = arith.constant 0 : i32
    return %c0_i32, %c0_i32_0 : i32, i32
  }
  func.func @transform_2(%arg0: i32) -> (i32, i32) {
    %c0_i32 = arith.constant 0 : i32
    %c0_i32_0 = arith.constant 0 : i32
    %c0_i32_1 = arith.constant 0 : i32
    return %c0_i32, %c0_i32_0 : i32, i32
  }
  func.func @transform_3(%arg0: i32) -> (i32, i32) {
    %c0_i32 = arith.constant 0 : i32
    %c0_i32_0 = arith.constant 0 : i32
    %c0_i32_1 = arith.constant 0 : i32
    return %c0_i32, %c0_i32_0 : i32, i32
  }
  func.func @transform_4(%arg0: i32) -> (i32, i32) {
    %c0_i32 = arith.constant 0 : i32
    %c0_i32_0 = arith.constant 0 : i32
    %c0_i32_1 = arith.constant 0 : i32
    return %c0_i32, %c0_i32_0 : i32, i32
  }
  func.func @transform_5(%arg0: i32) -> (i32, i32) {
    %c0_i32 = arith.constant 0 : i32
    %c0_i32_0 = arith.constant 0 : i32
    return %arg0, %c0_i32 : i32, i32
  }
}

</mosaic_0001>

<llo_original>
// kernel: tpu_custom_call.1
$region0: #{tpu_custom_call.1}
  #allocation0 [shape = 'u32[]', space=smem, size = 0x4, offset = 0x4, fixed_abs, tag = 'smem constant byte address 0x4 - core index']
  #allocation1 [shape = 'u32[144,128]{1,0:T(1,128)}', space=vmem, size = 0x12000, scoped, tag = 'internal scratch']
  %s0 = inlined_call_operand.hbm [shape: f32[16,16], index: 0, kind: input, shape index: {}]
  %s1 = inlined_call_operand.hbm [shape: f32[16,32], index: 1, kind: input, shape index: {}]
  %s2 = inlined_call_operand.vmem [shape: f32[32,32], index: 2, kind: input, shape index: {}]
  %s3 = inlined_call_operand.vmem [shape: f32[32,4], index: 3, kind: input, shape index: {}]
  %s4 = inlined_call_operand.vmem [shape: f32[3,32], index: 4, kind: input, shape index: {}]
  %s5 = inlined_call_operand.vmem [shape: f32[16,4], index: 5, kind: output, shape index: {}]
  %s6 = sld [smem:[#allocation0]]
  $region38: #{tpu_custom_call.1} parent=0
    _
  %s8 = ssub.s32 1, %s6
  %s9 = scalar_select 0, %s8, %s6
  $region1: #{tpu_custom_call.1} parent=0
    #allocation2 [shape = 'u8[8192]{0}', space=vmem, size = 0x2000, scoped, tag = 'input window, operand 0, single buffered']
    #allocation3 [shape = 's32[1]{0}', space=sflag, size = 0x4, scoped, tag = 'scoped memory for tpu_custom_call.1']
    #allocation4 [shape = 'u8[8192]{0}', space=vmem, size = 0x2000, scoped, tag = 'input window, operand 1, single buffered']
    #allocation5 [shape = 's32[1]{0}', space=sflag, size = 0x4, scoped, tag = 'scoped memory for tpu_custom_call.1']
    %10 = vsyncpa [#allocation3], 0
    %11 = vsyncpa [#allocation5], 0
    // Predicated region
    $region2: #{tpu_custom_call.1} parent=1 // pred_check
      _
    $region3: #{tpu_custom_call.1} parent=1 // pred_check_branch
      %13 = sbr.rel (0) target = $region5
    $region4: #{tpu_custom_call.1} parent=1 // pred_region
      %s15 = ssub.s32 256, 256
      %16 = vsyncadd [#allocation3], %s15
      %s17 = sshll.u32 [#allocation2], 4
      %s18 = int_to_ptr.vmem [resolvable:$true] %s17
      %23 = dma.hbm_to_vmem [thread:$0]  %s0, 256, %s18, [#allocation3], 128, 128, 8
    $region5: #{tpu_custom_call.1} parent=1 // pred_fallthru
      _
    // Predicated region
    $region6: #{tpu_custom_call.1} parent=1 // pred_check
      _
    $region7: #{tpu_custom_call.1} parent=1 // pred_check_branch
      %25 = sbr.rel (0) target = $region9
    $region8: #{tpu_custom_call.1} parent=1 // pred_region
      %s27 = ssub.s32 256, 256
      %28 = vsyncadd [#allocation5], %s27
      %s29 = sshll.u32 [#allocation4], 4
      %s30 = int_to_ptr.vmem [resolvable:$true] %s29
      %35 = dma.hbm_to_vmem [thread:$0]  %s1, 256, %s30, [#allocation5], 128, 128, 8
    $region9: #{tpu_custom_call.1} parent=1 // pred_fallthru
      _
    // Predicated region
    $region10: #{tpu_custom_call.1} parent=1 // pred_check
      _
    $region11: #{tpu_custom_call.1} parent=1 // pred_check_branch
      %37 = sbr.rel (0) target = $region13
    $region12: #{tpu_custom_call.1} parent=1 // pred_region
      _
    $region13: #{tpu_custom_call.1} parent=1 // pred_fallthru
      _
    // Predicated region
    $region14: #{tpu_custom_call.1} parent=1 // pred_check
      _
    $region15: #{tpu_custom_call.1} parent=1 // pred_check_branch
      %39 = sbr.rel (0) target = $region17
    $region16: #{tpu_custom_call.1} parent=1 // pred_region
      _
    $region17: #{tpu_custom_call.1} parent=1 // pred_fallthru
      _
    // Predicated region
    $region18: #{tpu_custom_call.1} parent=1 // pred_check
      _
    $region19: #{tpu_custom_call.1} parent=1 // pred_check_branch
      %41 = sbr.rel (0) target = $region21
    $region20: #{tpu_custom_call.1} parent=1 // pred_region
      _
    $region21: #{tpu_custom_call.1} parent=1 // pred_fallthru
      _
    // Predicated region
    $region22: #{tpu_custom_call.1} parent=1 // pred_check
      _
    $region23: #{tpu_custom_call.1} parent=1 // pred_check_branch
      %43 = sbr.rel (0) target = $region25
    $region24: #{tpu_custom_call.1} parent=1 // pred_region
      %44 = dma.done [#allocation3], 256
    $region25: #{tpu_custom_call.1} parent=1 // pred_fallthru
      _
    // Predicated region
    $region26: #{tpu_custom_call.1} parent=1 // pred_check
      _
    $region27: #{tpu_custom_call.1} parent=1 // pred_check_branch
      %46 = sbr.rel (0) target = $region29
    $region28: #{tpu_custom_call.1} parent=1 // pred_region
      %47 = dma.done [#allocation5], 256
    $region29: #{tpu_custom_call.1} parent=1 // pred_fallthru
      _
    %v48 = vld [vmem:[#allocation2] sm:$0xff]
    %v49 = vld [vmem:[#allocation2 + $0x8] sm:$0xff]
    %v50 = vld [vmem:[#allocation4] sm:$0xff]
    %v51 = vld [vmem:[#allocation4 + $0x8] sm:$0xff]
    %v52 = vld [vmem:[%s4] sm:$0x1]
    %v53 = vlaneseq
    %v54 = vshrl.u32 %v53, 7
    %v55 = vsub.s32 0, %v54
    %v56 = vrot.slane %v52, %v55
    %vm57 = vcmask 130048
    %v59 = vsel %vm57, %v48, 0
    %v62 = vsel %vm57, %v49, 0
    %64 = vmatprep.subr.mxu0 0.0
    %65 = vmatpush1.msra.mxu0 %v50
    %66 = vmatprep.subr.mxu0 0.0
    %67 = vmatpush1.msra.mxu0 %v51
    %68 = vmatprep.subr.mxu0 0.0
    %69 = vmatpush1.msra.mxu0 0.0
    %70 = vmatprep.subr.mxu0 0.0
    %71 = vmatpush1.msra.mxu0 0.0
    %72 = vmatprep.subr.mxu0 0.0
    %73 = vmatpush1.msra.mxu0 0.0
    %74 = vmatprep.subr.mxu0 0.0
    %75 = vmatpush1.msra.mxu0 0.0
    %76 = vmatprep.subr.mxu0 0.0
    %77 = vmatpush1.msra.mxu0 0.0
    %78 = vmatprep.subr.mxu0 0.0
    %79 = vmatpush1.msra.mxu0 0.0
    %80 = vmatprep.subr.mxu0 0.0
    %81 = vmatpush1.msra.mxu0 0.0
    %82 = vmatprep.subr.mxu0 0.0
    %83 = vmatpush1.msra.mxu0 0.0
    %84 = vmatprep.subr.mxu0 0.0
    %85 = vmatpush1.msra.mxu0 0.0
    %86 = vmatprep.subr.mxu0 0.0
    %87 = vmatpush1.msra.mxu0 0.0
    %88 = vmatprep.subr.mxu0 0.0
    %89 = vmatpush1.msra.mxu0 0.0
    %90 = vmatprep.subr.mxu0 0.0
    %91 = vmatpush1.msra.mxu0 0.0
    %92 = vmatprep.subr.mxu0 0.0
    %93 = vmatpush1.msra.mxu0 0.0
    %94 = vmatprep.subr.mxu0 0.0
    %95 = vmatpush1.msra.mxu0 0.0
    %96 = vmatprep.subr.mxu0 0.0
    %97 = vmatpush1.msra.mxu0 0.0
    %98 = vmatprep.subr.mxu0 0.0
    %99 = vmatpush1.msra.mxu0 0.0
    %100 = vmatprep.subr.mxu0 0.0
    %101 = vmatpush1.msra.mxu0 0.0
    %102 = vmatprep.subr.mxu0 0.0
    %103 = vmatpush1.msra.mxu0 0.0
    %104 = vmatprep.subr.mxu0 0.0
    %105 = vmatpush1.msra.mxu0 0.0
    %106 = vmatprep.subr.mxu0 0.0
    %107 = vmatpush1.msra.mxu0 0.0
    %108 = vmatprep.subr.mxu0 0.0
    %109 = vmatpush1.msra.mxu0 0.0
    %110 = vmatprep.subr.mxu0 0.0
    %111 = vmatpush1.msra.mxu0 0.0
    %112 = vmatprep.subr.mxu0 0.0
    %113 = vmatpush1.msra.mxu0 0.0
    %114 = vmatprep.subr.mxu0 0.0
    %115 = vmatpush1.msra.mxu0 0.0
    %116 = vmatprep.subr.mxu0 0.0
    %117 = vmatpush1.msra.mxu0 0.0
    %118 = vmatprep.subr.mxu0 0.0
    %119 = vmatpush1.msra.mxu0 0.0
    %120 = vmatprep.subr.mxu0 0.0
    %121 = vmatpush1.msra.mxu0 0.0
    %122 = vmatprep.subr.mxu0 0.0
    %123 = vmatpush1.msra.mxu0 0.0
    %124 = vmatprep.subr.mxu0 0.0
    %125 = vmatpush1.msra.mxu0 0.0
    %126 = vmatprep.subr.mxu0 0.0
    %127 = vmatpush1.msra.mxu0 0.0
    %128 = vmatprep.mubr.f32.mxu0 0.0
    %129 = vmatmul.mubr.f32.gmra.mrb[0].mxu0 %v59
    %v130 = vpop.f32.mrb[0].mxu0
    %v131 = vadd.f32 %v56, %v130
    %v132 = vpop.f32.mrb[0].mxu0
    %133 = vmatprep.mubr.f32.mxu0 0.0
    %134 = vmatmul.mubr.f32.gmra.mrb[0].mxu0 %v62
    %v135 = vpop.f32.mrb[0].mxu0
    %v136 = vadd.f32 %v56, %v135
    %v137 = vpop.f32.mrb[0].mxu0
    %138 = vdwg.mxu0
    %v139 = vmax.f32 %v131, 0.0
    %v140 = vmax.f32 %v136, 0.0
    %v141 = vand.u32 2147483647, %v131
    %v142 = vand.u32 2147483647, %v136
    %v143 = vsub.f32 0.0, %v141
    %v144 = vsub.f32 0.0, %v142
    %v145 = vmul.f32 %v143, 1.442695
    %v146 = vpow.pop %v145
    %v147 = vmul.f32 %v144, 1.442695
    %v148 = vpow.pop %v147
    %v149 = vadd.f32 %v146, 1.0
    %v150 = vlog2.pop %v149
    %v151 = vmul.f32 %v150, 0.6931472
    %v152 = vmul.f32 -0.5, %v146
    %v153 = vadd.f32 %v152, 1.0
    %v154 = vmul.f32 %v153, %v146
    %v155 = vand.u32 2147483647, %v146
    %vm156 = vcmp.lt.f32.partialorder %v155, 0.0004427343
    %v157 = vsel %vm156, %v154, %v151
    %v158 = vadd.f32 %v148, 1.0
    %v159 = vlog2.pop %v158
    %v160 = vmul.f32 %v159, 0.6931472
    %v161 = vmul.f32 -0.5, %v148
    %v162 = vadd.f32 %v161, 1.0
    %v163 = vmul.f32 %v162, %v148
    %v164 = vand.u32 2147483647, %v148
    %vm165 = vcmp.lt.f32.partialorder %v164, 0.0004427343
    %v166 = vsel %vm165, %v163, %v160
    %v167 = vadd.f32 %v139, %v157
    %v168 = vadd.f32 %v140, %v166
    %v169 = vld [vmem:[%s2] sm:$0xff]
    %v170 = vld [vmem:[%s2 + $0x8] sm:$0xff]
    %v171 = vld [vmem:[%s2 + $0x10] sm:$0xff]
    %v172 = vld [vmem:[%s2 + $0x18] sm:$0xff]
    %v173 = vld [vmem:[%s4 + $0x1] sm:$0x1]
    %v174 = vlaneseq
    %v175 = vshrl.u32 %v174, 7
    %v176 = vsub.s32 0, %v175
    %v177 = vrot.slane %v173, %v176
    %vm178 = vcmask 261120
    %v180 = vsel %vm178, %v167, 0
    %v183 = vsel %vm178, %v168, 0
    %185 = vmatprep.subr.mxu0 0.0
    %186 = vmatpush1.msra.mxu0 %v169
    %187 = vmatprep.subr.mxu0 0.0
    %188 = vmatpush1.msra.mxu0 %v170
    %189 = vmatprep.subr.mxu0 0.0
    %190 = vmatpush1.msra.mxu0 %v171
    %191 = vmatprep.subr.mxu0 0.0
    %192 = vmatpush1.msra.mxu0 %v172
    %193 = vmatprep.subr.mxu0 0.0
    %194 = vmatpush1.msra.mxu0 0.0
    %195 = vmatprep.subr.mxu0 0.0
    %196 = vmatpush1.msra.mxu0 0.0
    %197 = vmatprep.subr.mxu0 0.0
    %198 = vmatpush1.msra.mxu0 0.0
    %199 = vmatprep.subr.mxu0 0.0
    %200 = vmatpush1.msra.mxu0 0.0
    %201 = vmatprep.subr.mxu0 0.0
    %202 = vmatpush1.msra.mxu0 0.0
    %203 = vmatprep.subr.mxu0 0.0
    %204 = vmatpush1.msra.mxu0 0.0
    %205 = vmatprep.subr.mxu0 0.0
    %206 = vmatpush1.msra.mxu0 0.0
    %207 = vmatprep.subr.mxu0 0.0
    %208 = vmatpush1.msra.mxu0 0.0
    %209 = vmatprep.subr.mxu0 0.0
    %210 = vmatpush1.msra.mxu0 0.0
    %211 = vmatprep.subr.mxu0 0.0
    %212 = vmatpush1.msra.mxu0 0.0
    %213 = vmatprep.subr.mxu0 0.0
    %214 = vmatpush1.msra.mxu0 0.0
    %215 = vmatprep.subr.mxu0 0.0
    %216 = vmatpush1.msra.mxu0 0.0
    %217 = vmatprep.subr.mxu0 0.0
    %218 = vmatpush1.msra.mxu0 0.0
    %219 = vmatprep.subr.mxu0 0.0
    %220 = vmatpush1.msra.mxu0 0.0
    %221 = vmatprep.subr.mxu0 0.0
    %222 = vmatpush1.msra.mxu0 0.0
    %223 = vmatprep.subr.mxu0 0.0
    %224 = vmatpush1.msra.mxu0 0.0
    %225 = vmatprep.subr.mxu0 0.0
    %226 = vmatpush1.msra.mxu0 0.0
    %227 = vmatprep.subr.mxu0 0.0
    %228 = vmatpush1.msra.mxu0 0.0
    %229 = vmatprep.subr.mxu0 0.0
    %230 = vmatpush1.msra.mxu0 0.0
    %231 = vmatprep.subr.mxu0 0.0
    %232 = vmatpush1.msra.mxu0 0.0
    %233 = vmatprep.subr.mxu0 0.0
    %234 = vmatpush1.msra.mxu0 0.0
    %235 = vmatprep.subr.mxu0 0.0
    %236 = vmatpush1.msra.mxu0 0.0
    %237 = vmatprep.subr.mxu0 0.0
    %238 = vmatpush1.msra.mxu0 0.0
    %239 = vmatprep.subr.mxu0 0.0
    %240 = vmatpush1.msra.mxu0 0.0
    %241 = vmatprep.subr.mxu0 0.0
    %242 = vmatpush1.msra.mxu0 0.0
    %243 = vmatprep.subr.mxu0 0.0
    %244 = vmatpush1.msra.mxu0 0.0
    %245 = vmatprep.subr.mxu0 0.0
    %246 = vmatpush1.msra.mxu0 0.0
    %247 = vmatprep.subr.mxu0 0.0
    %248 = vmatpush1.msra.mxu0 0.0
    %249 = vmatprep.mubr.f32.mxu0 0.0
    %250 = vmatmul.mubr.f32.gmra.mrb[0].mxu0 %v180
    %v251 = vpop.f32.mrb[0].mxu0
    %v252 = vadd.f32 %v177, %v251
    %v253 = vpop.f32.mrb[0].mxu0
    %254 = vmatprep.mubr.f32.mxu0 0.0
    %255 = vmatmul.mubr.f32.gmra.mrb[0].mxu0 %v183
    %v256 = vpop.f32.mrb[0].mxu0
    %v257 = vadd.f32 %v177, %v256
    %v258 = vpop.f32.mrb[0].mxu0
    %259 = vdwg.mxu0
    %v260 = vmax.f32 %v252, 0.0
    %v261 = vmax.f32 %v257, 0.0
    %v262 = vand.u32 2147483647, %v252
    %v263 = vand.u32 2147483647, %v257
    %v264 = vsub.f32 0.0, %v262
    %v265 = vsub.f32 0.0, %v263
    %v266 = vmul.f32 %v264, 1.442695
    %v267 = vpow.pop %v266
    %v268 = vmul.f32 %v265, 1.442695
    %v269 = vpow.pop %v268
    %v270 = vadd.f32 %v267, 1.0
    %v271 = vlog2.pop %v270
    %v272 = vmul.f32 %v271, 0.6931472
    %v273 = vmul.f32 -0.5, %v267
    %v274 = vadd.f32 %v273, 1.0
    %v275 = vmul.f32 %v274, %v267
    %v276 = vand.u32 2147483647, %v267
    %vm277 = vcmp.lt.f32.partialorder %v276, 0.0004427343
    %v278 = vsel %vm277, %v275, %v272
    %v279 = vadd.f32 %v269, 1.0
    %v280 = vlog2.pop %v279
    %v281 = vmul.f32 %v280, 0.6931472
    %v282 = vmul.f32 -0.5, %v269
    %v283 = vadd.f32 %v282, 1.0
    %v284 = vmul.f32 %v283, %v269
    %v285 = vand.u32 2147483647, %v269
    %vm286 = vcmp.lt.f32.partialorder %v285, 0.0004427343
    %v287 = vsel %vm286, %v284, %v281
    %v288 = vadd.f32 %v260, %v278
    %v289 = vadd.f32 %v261, %v287
    %v290 = vld [vmem:[%s3] sm:$0xff]
    %v291 = vld [vmem:[%s3 + $0x8] sm:$0xff]
    %v292 = vld [vmem:[%s3 + $0x10] sm:$0xff]
    %v293 = vld [vmem:[%s3 + $0x18] sm:$0xff]
    %v294 = vld [vmem:[%s4 + $0x2] sm:$0x1]
    %v295 = vlaneseq
    %v296 = vshrl.u32 %v295, 7
    %v297 = vsub.s32 0, %v296
    %v298 = vrot.slane %v294, %v297
    %v300 = vsel %vm178, %v288, 0
    %v303 = vsel %vm178, %v289, 0
    %305 = vmatprep.subr.mxu0 0.0
    %306 = vmatpush1.msra.mxu0 %v290
    %307 = vmatprep.subr.mxu0 0.0
    %308 = vmatpush1.msra.mxu0 %v291
    %309 = vmatprep.subr.mxu0 0.0
    %310 = vmatpush1.msra.mxu0 %v292
    %311 = vmatprep.subr.mxu0 0.0
    %312 = vmatpush1.msra.mxu0 %v293
    %313 = vmatprep.subr.mxu0 0.0
    %314 = vmatpush1.msra.mxu0 0.0
    %315 = vmatprep.subr.mxu0 0.0
    %316 = vmatpush1.msra.mxu0 0.0
    %317 = vmatprep.subr.mxu0 0.0
    %318 = vmatpush1.msra.mxu0 0.0
    %319 = vmatprep.subr.mxu0 0.0
    %320 = vmatpush1.msra.mxu0 0.0
    %321 = vmatprep.subr.mxu0 0.0
    %322 = vmatpush1.msra.mxu0 0.0
    %323 = vmatprep.subr.mxu0 0.0
    %324 = vmatpush1.msra.mxu0 0.0
    %325 = vmatprep.subr.mxu0 0.0
    %326 = vmatpush1.msra.mxu0 0.0
    %327 = vmatprep.subr.mxu0 0.0
    %328 = vmatpush1.msra.mxu0 0.0
    %329 = vmatprep.subr.mxu0 0.0
    %330 = vmatpush1.msra.mxu0 0.0
    %331 = vmatprep.subr.mxu0 0.0
    %332 = vmatpush1.msra.mxu0 0.0
    %333 = vmatprep.subr.mxu0 0.0
    %334 = vmatpush1.msra.mxu0 0.0
    %335 = vmatprep.subr.mxu0 0.0
    %336 = vmatpush1.msra.mxu0 0.0
    %337 = vmatprep.subr.mxu0 0.0
    %338 = vmatpush1.msra.mxu0 0.0
    %339 = vmatprep.subr.mxu0 0.0
    %340 = vmatpush1.msra.mxu0 0.0
    %341 = vmatprep.subr.mxu0 0.0
    %342 = vmatpush1.msra.mxu0 0.0
    %343 = vmatprep.subr.mxu0 0.0
    %344 = vmatpush1.msra.mxu0 0.0
    %345 = vmatprep.subr.mxu0 0.0
    %346 = vmatpush1.msra.mxu0 0.0
    %347 = vmatprep.subr.mxu0 0.0
    %348 = vmatpush1.msra.mxu0 0.0
    %349 = vmatprep.subr.mxu0 0.0
    %350 = vmatpush1.msra.mxu0 0.0
    %351 = vmatprep.subr.mxu0 0.0
    %352 = vmatpush1.msra.mxu0 0.0
    %353 = vmatprep.subr.mxu0 0.0
    %354 = vmatpush1.msra.mxu0 0.0
    %355 = vmatprep.subr.mxu0 0.0
    %356 = vmatpush1.msra.mxu0 0.0
    %357 = vmatprep.subr.mxu0 0.0
    %358 = vmatpush1.msra.mxu0 0.0
    %359 = vmatprep.subr.mxu0 0.0
    %360 = vmatpush1.msra.mxu0 0.0
    %361 = vmatprep.subr.mxu0 0.0
    %362 = vmatpush1.msra.mxu0 0.0
    %363 = vmatprep.subr.mxu0 0.0
    %364 = vmatpush1.msra.mxu0 0.0
    %365 = vmatprep.subr.mxu0 0.0
    %366 = vmatpush1.msra.mxu0 0.0
    %367 = vmatprep.subr.mxu0 0.0
    %368 = vmatpush1.msra.mxu0 0.0
    %369 = vmatprep.mubr.f32.mxu0 0.0
    %370 = vmatmul.mubr.f32.gmra.mrb[0].mxu0 %v300
    %v371 = vpop.f32.mrb[0].mxu0
    %v372 = vadd.f32 %v298, %v371
    %v373 = vpop.f32.mrb[0].mxu0
    %374 = vmatprep.mubr.f32.mxu0 0.0
    %375 = vmatmul.mubr.f32.gmra.mrb[0].mxu0 %v303
    %v376 = vpop.f32.mrb[0].mxu0
    %v377 = vadd.f32 %v298, %v376
    %v378 = vpop.f32.mrb[0].mxu0
    %379 = vdwg.mxu0
    %vm380 = vcmask 31744
    %381 = vst.msk [vmem:[%s5] sm:$0xff] %vm380, %v372
    %382 = vst.msk [vmem:[%s5 + $0x8] sm:$0xff] %vm380, %v377
    // Predicated region
    $region30: #{tpu_custom_call.1} parent=1 // pred_check
      _
    $region31: #{tpu_custom_call.1} parent=1 // pred_check_branch
      %384 = sbr.rel (0) target = $region33
    $region32: #{tpu_custom_call.1} parent=1 // pred_region
      _
    $region33: #{tpu_custom_call.1} parent=1 // pred_fallthru
      _
    // Predicated region
    $region34: #{tpu_custom_call.1} parent=1 // pred_check
      _
    $region35: #{tpu_custom_call.1} parent=1 // pred_check_branch
      %386 = sbr.rel (0) target = $region37
    $region36: #{tpu_custom_call.1} parent=1 // pred_region
      _
    $region37: #{tpu_custom_call.1} parent=1 // pred_fallthru
      _
    %387 = vsyncpa [#allocation3], 1
    %388 = vsyncpa [#allocation5], 1

// kernel: tpu_custom_call.1
$region0: #{tpu_custom_call.1}
  #allocation0 [shape = 'u32[]', space=smem, size = 0x4, offset = 0x4, fixed_abs, tag = 'smem constant byte address 0x4 - core index']
  #allocation1 [shape = 'u32[144,128]{1,0:T(1,128)}', space=vmem, size = 0x12000, scoped, tag = 'internal scratch']
  %s0 = inlined_call_operand.hbm [shape: f32[16,16], index: 0, kind: input, shape index: {}]
  %s1 = inlined_call_operand.hbm [shape: f32[16,32], index: 1, kind: input, shape index: {}]
  %s2 = inlined_call_operand.vmem [shape: f32[32,32], index: 2, kind: input, shape index: {}]
  %s3 = inlined_call_operand.vmem [shape: f32[32,4], index: 3, kind: input, shape index: {}]
  %s4 = inlined_call_operand.vmem [shape: f32[3,32], index: 4, kind: input, shape index: {}]
  %s5 = inlined_call_operand.vmem [shape: f32[16,4], index: 5, kind: output, shape index: {}]
  %s6 = sld [smem:[#allocation0]]
  $region38: #{tpu_custom_call.1} parent=0
    _
  %s8 = ssub.s32 1, %s6
  %s9 = scalar_select 0, %s8, %s6
  $region1: #{tpu_custom_call.1} parent=0
    #allocation2 [shape = 'u8[8192]{0}', space=vmem, size = 0x2000, scoped, tag = 'input window, operand 0, single buffered']
    #allocation3 [shape = 's32[1]{0}', space=sflag, size = 0x4, scoped, tag = 'scoped memory for tpu_custom_call.1']
    #allocation4 [shape = 'u8[8192]{0}', space=vmem, size = 0x2000, scoped, tag = 'input window, operand 1, single buffered']
    #allocation5 [shape = 's32[1]{0}', space=sflag, size = 0x4, scoped, tag = 'scoped memory for tpu_custom_call.1']
    %10 = vsyncpa [#allocation3], 0
    %11 = vsyncpa [#allocation5], 0
    // Predicated region
    $region2: #{tpu_custom_call.1} parent=1 // pred_check
      _
    $region3: #{tpu_custom_call.1} parent=1 // pred_check_branch
      %13 = sbr.rel (0) target = $region5
    $region4: #{tpu_custom_call.1} parent=1 // pred_region
      %s15 = ssub.s32 256, 256
      %16 = vsyncadd [#allocation3], %s15
      %s17 = sshll.u32 [#allocation2], 4
      %s18 = int_to_ptr.vmem [resolvable:$true] %s17
      %23 = dma.hbm_to_vmem [thread:$0]  %s0, 256, %s18, [#allocation3], 128, 128, 8
    $region5: #{tpu_custom_call.1} parent=1 // pred_fallthru
      _
    // Predicated region
    $region6: #{tpu_custom_call.1} parent=1 // pred_check
      _
    $region7: #{tpu_custom_call.1} parent=1 // pred_check_branch
      %25 = sbr.rel (0) target = $region9
    $region8: #{tpu_custom_call.1} parent=1 // pred_region
      %s27 = ssub.s32 256, 256
      %28 = vsyncadd [#allocation5], %s27
      %s29 = sshll.u32 [#allocation4], 4
      %s30 = int_to_ptr.vmem [resolvable:$true] %s29
      %35 = dma.hbm_to_vmem [thread:$0]  %s1, 256, %s30, [#allocation5], 128, 128, 8
    $region9: #{tpu_custom_call.1} parent=1 // pred_fallthru
      _
    // Predicated region
    $region10: #{tpu_custom_call.1} parent=1 // pred_check
      _
    $region11: #{tpu_custom_call.1} parent=1 // pred_check_branch
      %37 = sbr.rel (0) target = $region13
    $region12: #{tpu_custom_call.1} parent=1 // pred_region
      _
    $region13: #{tpu_custom_call.1} parent=1 // pred_fallthru
      _
    // Predicated region
    $region14: #{tpu_custom_call.1} parent=1 // pred_check
      _
    $region15: #{tpu_custom_call.1} parent=1 // pred_check_branch
      %39 = sbr.rel (0) target = $region17
    $region16: #{tpu_custom_call.1} parent=1 // pred_region
      _
    $region17: #{tpu_custom_call.1} parent=1 // pred_fallthru
      _
    // Predicated region
    $region18: #{tpu_custom_call.1} parent=1 // pred_check
      _
    $region19: #{tpu_custom_call.1} parent=1 // pred_check_branch
      %41 = sbr.rel (0) target = $region21
    $region20: #{tpu_custom_call.1} parent=1 // pred_region
      _
    $region21: #{tpu_custom_call.1} parent=1 // pred_fallthru
      _
    // Predicated region
    $region22: #{tpu_custom_call.1} parent=1 // pred_check
      _
    $region23: #{tpu_custom_call.1} parent=1 // pred_check_branch
      %43 = sbr.rel (0) target = $region25
    $region24: #{tpu_custom_call.1} parent=1 // pred_region
      %44 = dma.done [#allocation3], 256
    $region25: #{tpu_custom_call.1} parent=1 // pred_fallthru
      _
    // Predicated region
    $region26: #{tpu_custom_call.1} parent=1 // pred_check
      _
    $region27: #{tpu_custom_call.1} parent=1 // pred_check_branch
      %46 = sbr.rel (0) target = $region29
    $region28: #{tpu_custom_call.1} parent=1 // pred_region
      %47 = dma.done [#allocation5], 256
    $region29: #{tpu_custom_call.1} parent=1 // pred_fallthru
      _
    %v48 = vld [vmem:[#allocation2] sm:$0xff]
    %v49 = vld [vmem:[#allocation2 + $0x8] sm:$0xff]
    %v50 = vld [vmem:[#allocation4] sm:$0xff]
    %v51 = vld [vmem:[#allocation4 + $0x8] sm:$0xff]
    %v52 = vld [vmem:[%s4] sm:$0x1]
    %v53 = vlaneseq
    %v54 = vshrl.u32 %v53, 7
    %v55 = vsub.s32 0, %v54
    %v56 = vrot.slane %v52, %v55
    %vm57 = vcmask 130048
    %v59 = vsel %vm57, %v48, 0
    %v62 = vsel %vm57, %v49, 0
    %64 = vmatprep.subr.mxu0 0.0
    %65 = vmatpush1.msra.mxu0 %v50
    %66 = vmatprep.subr.mxu0 0.0
    %67 = vmatpush1.msra.mxu0 %v51
    %68 = vmatprep.subr.mxu0 0.0
    %69 = vmatpush1.msra.mxu0 0.0
    %70 = vmatprep.subr.mxu0 0.0
    %71 = vmatpush1.msra.mxu0 0.0
    %72 = vmatprep.subr.mxu0 0.0
    %73 = vmatpush1.msra.mxu0 0.0
    %74 = vmatprep.subr.mxu0 0.0
    %75 = vmatpush1.msra.mxu0 0.0
    %76 = vmatprep.subr.mxu0 0.0
    %77 = vmatpush1.msra.mxu0 0.0
    %78 = vmatprep.subr.mxu0 0.0
    %79 = vmatpush1.msra.mxu0 0.0
    %80 = vmatprep.subr.mxu0 0.0
    %81 = vmatpush1.msra.mxu0 0.0
    %82 = vmatprep.subr.mxu0 0.0
    %83 = vmatpush1.msra.mxu0 0.0
    %84 = vmatprep.subr.mxu0 0.0
    %85 = vmatpush1.msra.mxu0 0.0
    %86 = vmatprep.subr.mxu0 0.0
    %87 = vmatpush1.msra.mxu0 0.0
    %88 = vmatprep.subr.mxu0 0.0
    %89 = vmatpush1.msra.mxu0 0.0
    %90 = vmatprep.subr.mxu0 0.0
    %91 = vmatpush1.msra.mxu0 0.0
    %92 = vmatprep.subr.mxu0 0.0
    %93 = vmatpush1.msra.mxu0 0.0
    %94 = vmatprep.subr.mxu0 0.0
    %95 = vmatpush1.msra.mxu0 0.0
    %96 = vmatprep.subr.mxu0 0.0
    %97 = vmatpush1.msra.mxu0 0.0
    %98 = vmatprep.subr.mxu0 0.0
    %99 = vmatpush1.msra.mxu0 0.0
    %100 = vmatprep.subr.mxu0 0.0
    %101 = vmatpush1.msra.mxu0 0.0
    %102 = vmatprep.subr.mxu0 0.0
    %103 = vmatpush1.msra.mxu0 0.0
    %104 = vmatprep.subr.mxu0 0.0
    %105 = vmatpush1.msra.mxu0 0.0
    %106 = vmatprep.subr.mxu0 0.0
    %107 = vmatpush1.msra.mxu0 0.0
    %108 = vmatprep.subr.mxu0 0.0
    %109 = vmatpush1.msra.mxu0 0.0
    %110 = vmatprep.subr.mxu0 0.0
    %111 = vmatpush1.msra.mxu0 0.0
    %112 = vmatprep.subr.mxu0 0.0
    %113 = vmatpush1.msra.mxu0 0.0
    %114 = vmatprep.subr.mxu0 0.0
    %115 = vmatpush1.msra.mxu0 0.0
    %116 = vmatprep.subr.mxu0 0.0
    %117 = vmatpush1.msra.mxu0 0.0
    %118 = vmatprep.subr.mxu0 0.0
    %119 = vmatpush1.msra.mxu0 0.0
    %120 = vmatprep.subr.mxu0 0.0
    %121 = vmatpush1.msra.mxu0 0.0
    %122 = vmatprep.subr.mxu0 0.0
    %123 = vmatpush1.msra.mxu0 0.0
    %124 = vmatprep.subr.mxu0 0.0
    %125 = vmatpush1.msra.mxu0 0.0
    %126 = vmatprep.subr.mxu0 0.0
    %127 = vmatpush1.msra.mxu0 0.0
    %128 = vmatprep.mubr.f32.mxu0 0.0
    %129 = vmatmul.mubr.f32.gmra.mrb[0].mxu0 %v59
    %v130 = vpop.f32.mrb[0].mxu0
    %v131 = vadd.f32 %v56, %v130
    %v132 = vpop.f32.mrb[0].mxu0
    %133 = vmatprep.mubr.f32.mxu0 0.0
    %134 = vmatmul.mubr.f32.gmra.mrb[0].mxu0 %v62
    %v135 = vpop.f32.mrb[0].mxu0
    %v136 = vadd.f32 %v56, %v135
    %v137 = vpop.f32.mrb[0].mxu0
    %138 = vdwg.mxu0
    %v139 = vmax.f32 %v131, 0.0
    %v140 = vmax.f32 %v136, 0.0
    %v141 = vand.u32 2147483647, %v131
    %v142 = vand.u32 2147483647, %v136
    %v143 = vsub.f32 0.0, %v141
    %v144 = vsub.f32 0.0, %v142
    %v145 = vmul.f32 %v143, 1.442695
    %v146 = vpow.pop %v145
    %v147 = vmul.f32 %v144, 1.442695
    %v148 = vpow.pop %v147
    %v149 = vadd.f32 %v146, 1.0
    %v150 = vlog2.pop %v149
    %v151 = vmul.f32 %v150, 0.6931472
    %v152 = vmul.f32 -0.5, %v146
    %v153 = vadd.f32 %v152, 1.0
    %v154 = vmul.f32 %v153, %v146
    %v155 = vand.u32 2147483647, %v146
    %vm156 = vcmp.lt.f32.partialorder %v155, 0.0004427343
    %v157 = vsel %vm156, %v154, %v151
    %v158 = vadd.f32 %v148, 1.0
    %v159 = vlog2.pop %v158
    %v160 = vmul.f32 %v159, 0.6931472
    %v161 = vmul.f32 -0.5, %v148
    %v162 = vadd.f32 %v161, 1.0
    %v163 = vmul.f32 %v162, %v148
    %v164 = vand.u32 2147483647, %v148
    %vm165 = vcmp.lt.f32.partialorder %v164, 0.0004427343
    %v166 = vsel %vm165, %v163, %v160
    %v167 = vadd.f32 %v139, %v157
    %v168 = vadd.f32 %v140, %v166
    %v169 = vld [vmem:[%s2] sm:$0xff]
    %v170 = vld [vmem:[%s2 + $0x8] sm:$0xff]
    %v171 = vld [vmem:[%s2 + $0x10] sm:$0xff]
    %v172 = vld [vmem:[%s2 + $0x18] sm:$0xff]
    %v173 = vld [vmem:[%s4 + $0x1] sm:$0x1]
    %v174 = vlaneseq
    %v175 = vshrl.u32 %v174, 7
    %v176 = vsub.s32 0, %v175
    %v177 = vrot.slane %v173, %v176
    %vm178 = vcmask 261120
    %v180 = vsel %vm178, %v167, 0
    %v183 = vsel %vm178, %v168, 0
    %185 = vmatprep.subr.mxu0 0.0
    %186 = vmatpush1.msra.mxu0 %v169
    %187 = vmatprep.subr.mxu0 0.0
    %188 = vmatpush1.msra.mxu0 %v170
    %189 = vmatprep.subr.mxu0 0.0
    %190 = vmatpush1.msra.mxu0 %v171
    %191 = vmatprep.subr.mxu0 0.0
    %192 = vmatpush1.msra.mxu0 %v172
    %193 = vmatprep.subr.mxu0 0.0
    %194 = vmatpush1.msra.mxu0 0.0
    %195 = vmatprep.subr.mxu0 0.0
    %196 = vmatpush1.msra.mxu0 0.0
    %197 = vmatprep.subr.mxu0 0.0
    %198 = vmatpush1.msra.mxu0 0.0
    %199 = vmatprep.subr.mxu0 0.0
    %200 = vmatpush1.msra.mxu0 0.0
    %201 = vmatprep.subr.mxu0 0.0
    %202 = vmatpush1.msra.mxu0 0.0
    %203 = vmatprep.subr.mxu0 0.0
    %204 = vmatpush1.msra.mxu0 0.0
    %205 = vmatprep.subr.mxu0 0.0
    %206 = vmatpush1.msra.mxu0 0.0
    %207 = vmatprep.subr.mxu0 0.0
    %208 = vmatpush1.msra.mxu0 0.0
    %209 = vmatprep.subr.mxu0 0.0
    %210 = vmatpush1.msra.mxu0 0.0
    %211 = vmatprep.subr.mxu0 0.0
    %212 = vmatpush1.msra.mxu0 0.0
    %213 = vmatprep.subr.mxu0 0.0
    %214 = vmatpush1.msra.mxu0 0.0
    %215 = vmatprep.subr.mxu0 0.0
    %216 = vmatpush1.msra.mxu0 0.0
    %217 = vmatprep.subr.mxu0 0.0
    %218 = vmatpush1.msra.mxu0 0.0
    %219 = vmatprep.subr.mxu0 0.0
    %220 = vmatpush1.msra.mxu0 0.0
    %221 = vmatprep.subr.mxu0 0.0
    %222 = vmatpush1.msra.mxu0 0.0
    %223 = vmatprep.subr.mxu0 0.0
    %224 = vmatpush1.msra.mxu0 0.0
    %225 = vmatprep.subr.mxu0 0.0
    %226 = vmatpush1.msra.mxu0 0.0
    %227 = vmatprep.subr.mxu0 0.0
    %228 = vmatpush1.msra.mxu0 0.0
    %229 = vmatprep.subr.mxu0 0.0
    %230 = vmatpush1.msra.mxu0 0.0
    %231 = vmatprep.subr.mxu0 0.0
    %232 = vmatpush1.msra.mxu0 0.0
    %233 = vmatprep.subr.mxu0 0.0
    %234 = vmatpush1.msra.mxu0 0.0
    %235 = vmatprep.subr.mxu0 0.0
    %236 = vmatpush1.msra.mxu0 0.0
    %237 = vmatprep.subr.mxu0 0.0
    %238 = vmatpush1.msra.mxu0 0.0
    %239 = vmatprep.subr.mxu0 0.0
    %240 = vmatpush1.msra.mxu0 0.0
    %241 = vmatprep.subr.mxu0 0.0
    %242 = vmatpush1.msra.mxu0 0.0
    %243 = vmatprep.subr.mxu0 0.0
    %244 = vmatpush1.msra.mxu0 0.0
    %245 = vmatprep.subr.mxu0 0.0
    %246 = vmatpush1.msra.mxu0 0.0
    %247 = vmatprep.subr.mxu0 0.0
    %248 = vmatpush1.msra.mxu0 0.0
    %249 = vmatprep.mubr.f32.mxu0 0.0
    %250 = vmatmul.mubr.f32.gmra.mrb[0].mxu0 %v180
    %v251 = vpop.f32.mrb[0].mxu0
    %v252 = vadd.f32 %v177, %v251
    %v253 = vpop.f32.mrb[0].mxu0
    %254 = vmatprep.mubr.f32.mxu0 0.0
    %255 = vmatmul.mubr.f32.gmra.mrb[0].mxu0 %v183
    %v256 = vpop.f32.mrb[0].mxu0
    %v257 = vadd.f32 %v177, %v256
    %v258 = vpop.f32.mrb[0].mxu0
    %259 = vdwg.mxu0
    %v260 = vmax.f32 %v252, 0.0
    %v261 = vmax.f32 %v257, 0.0
    %v262 = vand.u32 2147483647, %v252
    %v263 = vand.u32 2147483647, %v257
    %v264 = vsub.f32 0.0, %v262
    %v265 = vsub.f32 0.0, %v263
    %v266 = vmul.f32 %v264, 1.442695
    %v267 = vpow.pop %v266
    %v268 = vmul.f32 %v265, 1.442695
    %v269 = vpow.pop %v268
    %v270 = vadd.f32 %v267, 1.0
    %v271 = vlog2.pop %v270
    %v272 = vmul.f32 %v271, 0.6931472
    %v273 = vmul.f32 -0.5, %v267
    %v274 = vadd.f32 %v273, 1.0
    %v275 = vmul.f32 %v274, %v267
    %v276 = vand.u32 2147483647, %v267
    %vm277 = vcmp.lt.f32.partialorder %v276, 0.0004427343
    %v278 = vsel %vm277, %v275, %v272
    %v279 = vadd.f32 %v269, 1.0
    %v280 = vlog2.pop %v279
    %v281 = vmul.f32 %v280, 0.6931472
    %v282 = vmul.f32 -0.5, %v269
    %v283 = vadd.f32 %v282, 1.0
    %v284 = vmul.f32 %v283, %v269
    %v285 = vand.u32 2147483647, %v269
    %vm286 = vcmp.lt.f32.partialorder %v285, 0.0004427343
    %v287 = vsel %vm286, %v284, %v281
    %v288 = vadd.f32 %v260, %v278
    %v289 = vadd.f32 %v261, %v287
    %v290 = vld [vmem:[%s3] sm:$0xff]
    %v291 = vld [vmem:[%s3 + $0x8] sm:$0xff]
    %v292 = vld [vmem:[%s3 + $0x10] sm:$0xff]
    %v293 = vld [vmem:[%s3 + $0x18] sm:$0xff]
    %v294 = vld [vmem:[%s4 + $0x2] sm:$0x1]
    %v295 = vlaneseq
    %v296 = vshrl.u32 %v295, 7
    %v297 = vsub.s32 0, %v296
    %v298 = vrot.slane %v294, %v297
    %v300 = vsel %vm178, %v288, 0
    %v303 = vsel %vm178, %v289, 0
    %305 = vmatprep.subr.mxu0 0.0
    %306 = vmatpush1.msra.mxu0 %v290
    %307 = vmatprep.subr.mxu0 0.0
    %308 = vmatpush1.msra.mxu0 %v291
    %309 = vmatprep.subr.mxu0 0.0
    %310 = vmatpush1.msra.mxu0 %v292
    %311 = vmatprep.subr.mxu0 0.0
    %312 = vmatpush1.msra.mxu0 %v293
    %313 = vmatprep.subr.mxu0 0.0
    %314 = vmatpush1.msra.mxu0 0.0
    %315 = vmatprep.subr.mxu0 0.0
    %316 = vmatpush1.msra.mxu0 0.0
    %317 = vmatprep.subr.mxu0 0.0
    %318 = vmatpush1.msra.mxu0 0.0
    %319 = vmatprep.subr.mxu0 0.0
    %320 = vmatpush1.msra.mxu0 0.0
    %321 = vmatprep.subr.mxu0 0.0
    %322 = vmatpush1.msra.mxu0 0.0
    %323 = vmatprep.subr.mxu0 0.0
    %324 = vmatpush1.msra.mxu0 0.0
    %325 = vmatprep.subr.mxu0 0.0
    %326 = vmatpush1.msra.mxu0 0.0
    %327 = vmatprep.subr.mxu0 0.0
    %328 = vmatpush1.msra.mxu0 0.0
    %329 = vmatprep.subr.mxu0 0.0
    %330 = vmatpush1.msra.mxu0 0.0
    %331 = vmatprep.subr.mxu0 0.0
    %332 = vmatpush1.msra.mxu0 0.0
    %333 = vmatprep.subr.mxu0 0.0
    %334 = vmatpush1.msra.mxu0 0.0
    %335 = vmatprep.subr.mxu0 0.0
    %336 = vmatpush1.msra.mxu0 0.0
    %337 = vmatprep.subr.mxu0 0.0
    %338 = vmatpush1.msra.mxu0 0.0
    %339 = vmatprep.subr.mxu0 0.0
    %340 = vmatpush1.msra.mxu0 0.0
    %341 = vmatprep.subr.mxu0 0.0
    %342 = vmatpush1.msra.mxu0 0.0
    %343 = vmatprep.subr.mxu0 0.0
    %344 = vmatpush1.msra.mxu0 0.0
    %345 = vmatprep.subr.mxu0 0.0
    %346 = vmatpush1.msra.mxu0 0.0
    %347 = vmatprep.subr.mxu0 0.0
    %348 = vmatpush1.msra.mxu0 0.0
    %349 = vmatprep.subr.mxu0 0.0
    %350 = vmatpush1.msra.mxu0 0.0
    %351 = vmatprep.subr.mxu0 0.0
    %352 = vmatpush1.msra.mxu0 0.0
    %353 = vmatprep.subr.mxu0 0.0
    %354 = vmatpush1.msra.mxu0 0.0
    %355 = vmatprep.subr.mxu0 0.0
    %356 = vmatpush1.msra.mxu0 0.0
    %357 = vmatprep.subr.mxu0 0.0
    %358 = vmatpush1.msra.mxu0 0.0
    %359 = vmatprep.subr.mxu0 0.0
    %360 = vmatpush1.msra.mxu0 0.0
    %361 = vmatprep.subr.mxu0 0.0
    %362 = vmatpush1.msra.mxu0 0.0
    %363 = vmatprep.subr.mxu0 0.0
    %364 = vmatpush1.msra.mxu0 0.0
    %365 = vmatprep.subr.mxu0 0.0
    %366 = vmatpush1.msra.mxu0 0.0
    %367 = vmatprep.subr.mxu0 0.0
    %368 = vmatpush1.msra.mxu0 0.0
    %369 = vmatprep.mubr.f32.mxu0 0.0
    %370 = vmatmul.mubr.f32.gmra.mrb[0].mxu0 %v300
    %v371 = vpop.f32.mrb[0].mxu0
    %v372 = vadd.f32 %v298, %v371
    %v373 = vpop.f32.mrb[0].mxu0
    %374 = vmatprep.mubr.f32.mxu0 0.0
    %375 = vmatmul.mubr.f32.gmra.mrb[0].mxu0 %v303
    %v376 = vpop.f32.mrb[0].mxu0
    %v377 = vadd.f32 %v298, %v376
    %v378 = vpop.f32.mrb[0].mxu0
    %379 = vdwg.mxu0
    %vm380 = vcmask 31744
    %381 = vst.msk [vmem:[%s5] sm:$0xff] %vm380, %v372
    %382 = vst.msk [vmem:[%s5 + $0x8] sm:$0xff] %vm380, %v377
    // Predicated region
    $region30: #{tpu_custom_call.1} parent=1 // pred_check
      _
    $region31: #{tpu_custom_call.1} parent=1 // pred_check_branch
      %384 = sbr.rel (0) target = $region33
    $region32: #{tpu_custom_call.1} parent=1 // pred_region
      _
    $region33: #{tpu_custom_call.1} parent=1 // pred_fallthru
      _
    // Predicated region
    $region34: #{tpu_custom_call.1} parent=1 // pred_check
      _
    $region35: #{tpu_custom_call.1} parent=1 // pred_check_branch
      %386 = sbr.rel (0) target = $region37
    $region36: #{tpu_custom_call.1} parent=1 // pred_region
      _
    $region37: #{tpu_custom_call.1} parent=1 // pred_fallthru
      _
    %387 = vsyncpa [#allocation3], 1
    %388 = vsyncpa [#allocation5], 1

</llo_original>
